<compile_context>
chip_gen: v5e
topology: v5e:2x2
jax: 0.10.0
libtpu: 0.0.40
codegen_flags: <defaults>
</compile_context>

<pallas_src>
import functools

import jax
import jax.numpy as jnp
import numpy as np
from jax import lax
from jax.experimental import pallas as pl
from jax.experimental.pallas import tpu as pltpu


def _round_up(x, m):
    return (x + m - 1) // m * m


def _vmem_capacity_bytes():
    """Physical VMEM per TensorCore; falls back to the v7x 64 MiB floor."""
    try:
        info = pltpu.get_tpu_info()
        for name in ("vmem_capacity_bytes", "vmem_bytes", "vmem_size_bytes"):
            v = getattr(info, name, None)
            if v:
                return int(v)
    except Exception:
        pass
    return 64 * 1024 * 1024


def _pick_tiles(N, D, C, vmem_budget):
    """Choose (tile_n, tile_c, c_pad).  tile_c == c_pad means resident-W path."""
    Daug = D + 1
    c_full = _round_up(C, 128)
    d_lane = _round_up(Daug, 128)

    def est(tn, tc, w_bufs):
        lane_n = _round_up(tn, 128)
        emb_b = 2 * _round_up(tn, 16) * d_lane * 2       # dbl-buffered bf16 emb tile
        w_b = w_bufs * _round_up(tc, 16) * d_lane * 2    # bf16 classifier tile(s)
        small = 10 * 8 * lane_n * 4                      # tags/pred/loss + scratch rows
        logit_b = 3 * tc * lane_n * 4                    # logits + live f32 temps
        return emb_b + w_b + small + logit_b

    # Row tile: 1024 on 128 MiB-class chips, 512 on 64 MiB (v7x).  Keep >= 2 row
    # tiles for large N so the "parallel" axis feeds both TensorCores.
    target_tn = 1024 if vmem_budget >= 80 * (1 << 20) else 512
    if N <= 256:
        tile_n = N                              # single full-dim tile, no padding
    else:
        tile_n = max(128, min(target_tn, _round_up((N + 1) // 2, 128)))

    tn = tile_n
    while True:
        # Resident-W fast path: whole classifier stays in VMEM, fetched once.
        if est(tn, c_full, 1) <= vmem_budget:
            return tn, c_full, c_full
        # Class-tiled path (online logsumexp across class tiles).
        for tc in (1024, 512, 256, 128):
            if tc < c_full and est(tn, tc, 2) <= vmem_budget:
                return tn, tc, _round_up(C, tc)
        if tn <= 128:
            return 128, 128, _round_up(C, 128)   # last resort
        tn = max(128, _round_up(tn // 2, 128))


def _logits_tile(w_ref, emb_ref):
    # (TC, TN) = W_aug (TC, D+1) @ emb_aug (TN, D+1)^T, f32 accumulation on MXU.
    return lax.dot_general(
        w_ref[...], emb_ref[...],
        dimension_numbers=(((1,), (1,)), ((), ())),
        preferred_element_type=jnp.float32)


def ner_loss_single_kernel(emb_ref, w_ref, tag_ref, pred_ref, loss_ref,
                           *, ignore_index):
    """Resident-W path: one class tile covers all (padded) classes."""
    logits = _logits_tile(w_ref, emb_ref)                       # (Cpad, TN)
    cls = lax.broadcasted_iota(jnp.int32, (logits.shape[0], 1), 0)  # (Cpad, 1)

    mx = jnp.max(logits, axis=0, keepdims=True)                 # (1, TN)
    pred_ref[...] = jnp.min(
        jnp.where(logits == mx, cls, jnp.int32(2147483647)),
        axis=0, keepdims=True)

    lse = mx + jnp.log(jnp.sum(jnp.exp(logits - mx), axis=0, keepdims=True))
    tag = tag_ref[...]                                          # (1, TN)
    picked = jnp.sum(jnp.where(cls == tag, logits, 0.0), axis=0, keepdims=True)
    loss_ref[...] = jnp.where(tag != ignore_index, lse - picked, 0.0)


def ner_loss_tiled_kernel(emb_ref, w_ref, tag_ref, pred_ref, loss_ref,
                          m_sc, l_sc, idx_sc, pick_sc,
                          *, tile_c, ignore_index):
    """Class-tiled path: online logsumexp + running first-occurrence argmax."""
    c = pl.program_id(1)
    nc = pl.num_programs(1)

    @pl.when(c == 0)
    def _init():
        # Finite sentinel (NOT -inf): exp(m_old - m_new) must stay NaN-free.
        m_sc[...] = jnp.full_like(m_sc, -3.0e38)
        l_sc[...] = jnp.zeros_like(l_sc)
        idx_sc[...] = jnp.zeros_like(idx_sc)
        pick_sc[...] = jnp.zeros_like(pick_sc)

    logits = _logits_tile(w_ref, emb_ref)                       # (TC, TN)
    # Column of global class ids, broadcast lazily inside the compares.
    cls = lax.broadcasted_iota(jnp.int32, (logits.shape[0], 1), 0) + c * tile_c

    tile_max = jnp.max(logits, axis=0, keepdims=True)           # (1, TN)
    tile_arg = jnp.min(
        jnp.where(logits == tile_max, cls, jnp.int32(2147483647)),
        axis=0, keepdims=True)

    m_old = m_sc[...]
    m_new = jnp.maximum(m_old, tile_max)
    l_sc[...] = (l_sc[...] * jnp.exp(m_old - m_new)
                 + jnp.sum(jnp.exp(logits - m_new), axis=0, keepdims=True))
    idx_sc[...] = jnp.where(tile_max > m_old, tile_arg, idx_sc[...])
    m_sc[...] = m_new

    # Target-class logit (the target lives in exactly one class tile; ignored
    # rows never match, so 'picked' stays 0 for them).
    tag = tag_ref[...]
    pick_sc[...] += jnp.sum(jnp.where(cls == tag, logits, 0.0),
                            axis=0, keepdims=True)

    @pl.when(c == nc - 1)
    def _finalize():
        pred_ref[...] = idx_sc[...]
        row_loss = m_sc[...] + jnp.log(l_sc[...]) - pick_sc[...]
        loss_ref[...] = jnp.where(tag != ignore_index, row_loss, 0.0)


def bert_model_forward(text, bio_tag, emb_table, fc_w, fc_b, *,
                       ignore_index=-100, vmem_budget=None):
    """Returns (loss_ent, ent_pre) matching Bert_Model.forward / self.ent_pre."""
    B, S = text.shape
    D = emb_table.shape[1]
    C = fc_w.shape[0]
    N = B * S
    Daug = D + 1

    cap = _vmem_capacity_bytes()
    vmem_limit = int(cap * 0.85)
    if vmem_budget is None:
        vmem_budget = int(cap * 0.70)           # ~45 MiB on v7x, ~90 MiB on v5e/v6e
    vmem_budget = min(vmem_budget, vmem_limit)

    tile_n, tile_c, c_pad = _pick_tiles(N, D, C, vmem_budget)
    n_c_tiles = c_pad // tile_c

    if N <= tile_n:
        tile_n = N                               # single full-dim row tile
        n_pad = N
    else:
        n_pad = _round_up(N, tile_n)
    n_row_tiles = n_pad // tile_n

    # --- glue: flatten, pad, gather bias-augmented embeddings (bf16) ---------
    ids = text.reshape(-1).astype(jnp.int32)
    tags = bio_tag.reshape(-1).astype(jnp.int32)
    if n_pad != N:
        ids = jnp.concatenate([ids, jnp.zeros((n_pad - N,), jnp.int32)])
        tags = jnp.concatenate(
            [tags, jnp.full((n_pad - N,), ignore_index, jnp.int32)])

    # Ones column folded into the table so the gather carries the bias operand.
    emb_table_aug = jnp.concatenate(
        [emb_table.astype(jnp.bfloat16),
         jnp.ones((emb_table.shape[0], 1), jnp.bfloat16)], axis=1)  # (V, D+1)
    # TODO(synk): for very large N*D, gather rows in-kernel via scalar-prefetched
    # ids + manual make_async_copy double-buffering instead of this HBM slab.
    emb = jnp.take(emb_table_aug, ids, axis=0)                      # (n_pad, D+1)
    tags_row = tags.reshape(1, n_pad)

    # Classifier with the bias as the last column; padded classes get -1e30
    # bias (finite!) so they never win the argmax and add ~0 to the logsumexp.
    w_aug = jnp.concatenate(
        [fc_w.astype(jnp.float32), fc_b.astype(jnp.float32)[:, None]],
        axis=1).astype(jnp.bfloat16)                                # (C, D+1)
    if c_pad > C:
        pad_rows = jnp.zeros((c_pad - C, Daug), jnp.bfloat16).at[:, D].set(-1e30)
        w_pad = jnp.concatenate([w_aug, pad_rows], axis=0)
    else:
        w_pad = w_aug

    out_shape = (jax.ShapeDtypeStruct((1, n_pad), jnp.int32),
                 jax.ShapeDtypeStruct((1, n_pad), jnp.float32))

    if n_c_tiles == 1:
        # Resident-W fast path: W block index never changes -> DMA'd once total.
        kernel = functools.partial(ner_loss_single_kernel,
                                   ignore_index=ignore_index)
        pred, loss_rows = pl.pallas_call(
            kernel,
            out_shape=out_shape,
            grid_spec=pltpu.PrefetchScalarGridSpec(
                num_scalar_prefetch=0,
                grid=(n_row_tiles,),
                in_specs=[
                    pl.BlockSpec((tile_n, Daug), lambda i: (i, 0)),   # emb rows
                    pl.BlockSpec((c_pad, Daug), lambda i: (0, 0)),    # resident W
                    pl.BlockSpec((1, tile_n), lambda i: (0, i)),      # bio tags
                ],
                out_specs=[
                    pl.BlockSpec((1, tile_n), lambda i: (0, i)),      # argmax preds
                    pl.BlockSpec((1, tile_n), lambda i: (0, i)),      # per-row loss
                ]),
            compiler_params=pltpu.CompilerParams(
                dimension_semantics=("parallel",),
                vmem_limit_bytes=vmem_limit),
        )(emb, w_pad, tags_row)
    else:
        kernel = functools.partial(ner_loss_tiled_kernel, tile_c=tile_c,
                                   ignore_index=ignore_index)
        pred, loss_rows = pl.pallas_call(
            kernel,
            out_shape=out_shape,
            grid_spec=pltpu.PrefetchScalarGridSpec(
                num_scalar_prefetch=0,
                grid=(n_row_tiles, n_c_tiles),     # class (reduction) axis last
                in_specs=[
                    pl.BlockSpec((tile_n, Daug), lambda i, c: (i, 0)),  # emb rows
                    pl.BlockSpec((tile_c, Daug), lambda i, c: (c, 0)),  # W class tile
                    pl.BlockSpec((1, tile_n), lambda i, c: (0, i)),     # bio tags
                ],
                out_specs=[
                    pl.BlockSpec((1, tile_n), lambda i, c: (0, i)),     # argmax preds
                    pl.BlockSpec((1, tile_n), lambda i, c: (0, i)),     # per-row loss
                ],
                scratch_shapes=[
                    pltpu.VMEM((1, tile_n), jnp.float32),   # running max
                    pltpu.VMEM((1, tile_n), jnp.float32),   # running sum-exp
                    pltpu.VMEM((1, tile_n), jnp.int32),     # running argmax
                    pltpu.VMEM((1, tile_n), jnp.float32),   # picked target logit
                ]),
            compiler_params=pltpu.CompilerParams(
                dimension_semantics=("parallel", "arbitrary"),
                vmem_limit_bytes=vmem_limit),
        )(emb, w_pad, tags_row)

    # Mean over non-ignored targets.  (Deviation: torch returns NaN when every
    # target is ignore_index; this returns 0.)
    n_valid = jnp.sum(bio_tag.reshape(-1).astype(jnp.int32)
                      != ignore_index).astype(jnp.float32)
    loss = jnp.sum(loss_rows) / jnp.maximum(n_valid, 1.0)
    return loss, pred[0, :N]


if __name__ == "__main__":
    # Small shapes consistent with the module (embedding_dim_rel == hidden_size_ent).
    num_corpus = 64      # vocab size == #entity classes
    D = 32               # embedding_dim_rel = hidden_size_ent
    B, S = 2, 8

    key = jax.random.PRNGKey(0)
    k1, k2, k3, k4, k5 = jax.random.split(key, 5)

    # Deterministic parameter init (synthetic; not a checkpoint load).
    emb_table = jax.random.normal(k1, (num_corpus, D), dtype=jnp.float32) * 0.02
    emb_table = emb_table.at[0].set(0.0)                        # padding_idx=0
    fc_w = jax.random.normal(k2, (num_corpus, D), dtype=jnp.float32) / np.sqrt(D)
    fc_b = jax.random.normal(k3, (num_corpus,), dtype=jnp.float32) * 0.01

    text = jax.random.randint(k4, (B, S), 0, num_corpus, dtype=jnp.int32)
    bio_tag = jax.random.randint(k5, (B, S), 0, num_corpus, dtype=jnp.int32)
    # segment_ids / attention_mask / head / tail / rel_tag are unused by forward.

    loss, ent_pre = bert_model_forward(text, bio_tag, emb_table, fc_w, fc_b)
    jax.block_until_ready((loss, ent_pre))

    # Reference with the same bf16 MXU operands as the kernel (its contract).
    emb32 = jnp.take(emb_table, text.reshape(-1), axis=0)
    emb_bf = emb32.astype(jnp.bfloat16)
    logits_bf = (jnp.dot(emb_bf, fc_w.astype(jnp.bfloat16).T,
                         preferred_element_type=jnp.float32)
                 + fc_b.astype(jnp.bfloat16).astype(jnp.float32))
    ref_pred = jnp.argmax(logits_bf, axis=-1).astype(jnp.int32)
    lse_bf = jax.nn.logsumexp(logits_bf, axis=-1)
    ref_loss_bf = jnp.mean(
        lse_bf - logits_bf[jnp.arange(B * S), bio_tag.reshape(-1)])

    # Full-f32 reference (original module math), looser tolerance for bf16 operands.
    logits32 = jnp.matmul(emb32, fc_w.T,
                          precision=jax.lax.Precision.HIGHEST) + fc_b
    lse32 = jax.nn.logsumexp(logits32, axis=-1)
    ref_loss_32 = jnp.mean(
        lse32 - logits32[jnp.arange(B * S), bio_tag.reshape(-1)])

    assert np.allclose(np.asarray(loss), np.asarray(ref_loss_bf),
                       atol=1e-3, rtol=1e-3), (loss, ref_loss_bf)
    assert np.allclose(np.asarray(loss), np.asarray(ref_loss_32),
                       atol=5e-3, rtol=5e-3), (loss, ref_loss_32)
    assert np.array_equal(np.asarray(ent_pre), np.asarray(ref_pred))
    print("KERNEL_OK")
</pallas_src>

<mosaic_0001>
module attributes {stable_mosaic.version = 11 : i64} {
  func.func @ner_loss_single_kernel(%arg0: i32, %arg1: memref<16x33xbf16, #tpu.memory_space<vmem>>, %arg2: memref<128x33xbf16, #tpu.memory_space<vmem>>, %arg3: memref<1x16xi32, #tpu.memory_space<vmem>>, %arg4: memref<1x16xi32, #tpu.memory_space<vmem>>, %arg5: memref<1x16xf32, #tpu.memory_space<vmem>>) attributes {dimension_semantics = [#tpu.dimension_semantics<parallel>], iteration_bounds = array<i64: 1>, scalar_prefetch = 0 : i64, scratch_operands = 0 : i64, tpu.core_type = #tpu.core_type<tc>, window_params = [{transform_indices = @transform_0, window_bounds = array<i64: 16, 33>}, {pipeline_mode = #tpu.pipeline_mode<synchronous>, transform_indices = @transform_1, window_bounds = array<i64: 128, 33>}, {transform_indices = @transform_2, window_bounds = array<i64: 1, 16>}, {transform_indices = @transform_3, window_bounds = array<i64: 1, 16>}, {transform_indices = @transform_4, window_bounds = array<i64: 1, 16>}]} {
    %c0 = arith.constant 0 : index
    %c0_0 = arith.constant 0 : index
    %0 = vector.load %arg2[%c0, %c0_0] : memref<128x33xbf16, #tpu.memory_space<vmem>>, vector<128x33xbf16>
    %c0_1 = arith.constant 0 : index
    %c0_2 = arith.constant 0 : index
    %1 = vector.load %arg1[%c0_1, %c0_2] : memref<16x33xbf16, #tpu.memory_space<vmem>>, vector<16x33xbf16>
    %cst = arith.constant dense<0.000000e+00> : vector<128x16xf32>
    %2 = tpu.matmul %0, %1, %cst {dimension_numbers = #tpu.dot_dimension_numbers<[1], [1], [0], [0], [0, 0, 1, 0], [], []>} : vector<128x33xbf16>, vector<16x33xbf16>, vector<128x16xf32> -> vector<128x16xf32>
    %3 = tpu.iota {dimensions = array<i32: 0>} : vector<128x1xi32>
    %cst_3 = arith.constant dense<0xFF800000> : vector<16xf32>
    %4 = vector.multi_reduction <maximumf>, %2, %cst_3 [0] : vector<128x16xf32> to vector<16xf32>
    %5 = vector.shape_cast %4 : vector<16xf32> to vector<1x16xf32>
    %6 = vector.broadcast %5 : vector<1x16xf32> to vector<128x16xf32>
    %7 = arith.cmpf oeq, %2, %6 : vector<128x16xf32>
    %c2147483647_i32 = arith.constant 2147483647 : i32
    %8 = vector.shape_cast %3 : vector<128x1xi32> to vector<128x1xi32>
    %9 = vector.broadcast %8 : vector<128x1xi32> to vector<128x16xi32>
    %10 = vector.broadcast %c2147483647_i32 : i32 to vector<128x16xi32>
    %11 = arith.select %7, %9, %10 : vector<128x16xi1>, vector<128x16xi32>
    %cst_4 = arith.constant dense<2147483647> : vector<16xi32>
    %12 = vector.multi_reduction <minsi>, %11, %cst_4 [0] : vector<128x16xi32> to vector<16xi32>
    %13 = vector.shape_cast %12 : vector<16xi32> to vector<1x16xi32>
    %c0_5 = arith.constant 0 : index
    %c0_6 = arith.constant 0 : index
    %14 = vector.load %arg4[%c0_5, %c0_6] : memref<1x16xi32, #tpu.memory_space<vmem>>, vector<1x16xi32>
    tpu.vector_store %arg4[%c0_5, %c0_6], %13 {strides = array<i32>} : memref<1x16xi32, #tpu.memory_space<vmem>>, vector<1x16xi32>,
    %15 = vector.broadcast %5 : vector<1x16xf32> to vector<128x16xf32>
    %16 = arith.subf %2, %15 : vector<128x16xf32>
    %17 = math.exp %16 : vector<128x16xf32>
    %cst_7 = arith.constant dense<0.000000e+00> : vector<16xf32>
    %18 = vector.multi_reduction <add>, %17, %cst_7 [0] : vector<128x16xf32> to vector<16xf32>
    %19 = vector.shape_cast %18 : vector<16xf32> to vector<1x16xf32>
    %20 = math.log %19 : vector<1x16xf32>
    %21 = arith.addf %5, %20 : vector<1x16xf32>
    %c0_8 = arith.constant 0 : index
    %c0_9 = arith.constant 0 : index
    %22 = vector.load %arg3[%c0_8, %c0_9] : memref<1x16xi32, #tpu.memory_space<vmem>>, vector<1x16xi32>
    %23 = vector.broadcast %3 : vector<128x1xi32> to vector<128x16xi32>
    %24 = vector.broadcast %22 : vector<1x16xi32> to vector<128x16xi32>
    %25 = arith.cmpi eq, %23, %24 : vector<128x16xi32>
    %cst_10 = arith.constant 0.000000e+00 : f32
    %26 = vector.broadcast %cst_10 : f32 to vector<128x16xf32>
    %27 = arith.select %25, %2, %26 : vector<128x16xi1>, vector<128x16xf32>
    %cst_11 = arith.constant dense<0.000000e+00> : vector<16xf32>
    %28 = vector.multi_reduction <add>, %27, %cst_11 [0] : vector<128x16xf32> to vector<16xf32>
    %29 = vector.shape_cast %28 : vector<16xf32> to vector<1x16xf32>
    %c-100_i32 = arith.constant -100 : i32
    %30 = vector.broadcast %c-100_i32 : i32 to vector<1x16xi32>
    %31 = arith.cmpi ne, %22, %30 : vector<1x16xi32>
    %32 = arith.subf %21, %29 : vector<1x16xf32>
    %cst_12 = arith.constant 0.000000e+00 : f32
    %33 = vector.broadcast %cst_12 : f32 to vector<1x16xf32>
    %34 = arith.select %31, %32, %33 : vector<1x16xi1>, vector<1x16xf32>
    %c0_13 = arith.constant 0 : index
    %c0_14 = arith.constant 0 : index
    %35 = vector.load %arg5[%c0_13, %c0_14] : memref<1x16xf32, #tpu.memory_space<vmem>>, vector<1x16xf32>
    tpu.vector_store %arg5[%c0_13, %c0_14], %34 {strides = array<i32>} : memref<1x16xf32, #tpu.memory_space<vmem>>, vector<1x16xf32>,
    return
  }
  func.func @transform_0(%arg0: i32) -> (i32, i32) {
    %c0_i32 = arith.constant 0 : i32
    %c0_i32_0 = arith.constant 0 : i32
    return %arg0, %c0_i32 : i32, i32
  }
  func.func @transform_1(%arg0: i32) -> (i32, i32) {
    %c0_i32 = arith.constant 0 : i32
    %c0_i32_0 = arith.constant 0 : i32
    %c0_i32_1 = arith.constant 0 : i32
    return %c0_i32, %c0_i32_0 : i32, i32
  }
  func.func @transform_2(%arg0: i32) -> (i32, i32) {
    %c0_i32 = arith.constant 0 : i32
    %c0_i32_0 = arith.constant 0 : i32
    return %c0_i32, %arg0 : i32, i32
  }
  func.func @transform_3(%arg0: i32) -> (i32, i32) {
    %c0_i32 = arith.constant 0 : i32
    %c0_i32_0 = arith.constant 0 : i32
    return %c0_i32, %arg0 : i32, i32
  }
  func.func @transform_4(%arg0: i32) -> (i32, i32) {
    %c0_i32 = arith.constant 0 : i32
    %c0_i32_0 = arith.constant 0 : i32
    return %c0_i32, %arg0 : i32, i32
  }
}

</mosaic_0001>

<llo_original>
// kernel: tpu_custom_call.1
$region0: #{tpu_custom_call.1}
  #allocation0 [shape = 'u32[]', space=smem, size = 0x4, offset = 0x4, fixed_abs, tag = 'smem constant byte address 0x4 - core index']
  #allocation1 [shape = 'u32[72,128]{1,0:T(1,128)}', space=vmem, size = 0x9000, scoped, tag = 'internal scratch']
  %s0 = inlined_call_operand.vmem [shape: bf16[16,33], index: 0, kind: input, shape index: {}]
  %s1 = inlined_call_operand.vmem [shape: bf16[128,33], index: 1, kind: input, shape index: {}]
  %s2 = inlined_call_operand.vmem [shape: s32[1,16], index: 2, kind: input, shape index: {}]
  %s3 = inlined_call_operand.hbm [shape: s32[1,16], index: 3, kind: output, shape index: {0}]
  %s4 = inlined_call_operand.hbm [shape: f32[1,16], index: 4, kind: output, shape index: {1}]
  %5 = xla_tuple %s3, %s4
  %s6 = sld [smem:[#allocation0]]
  $region30: #{tpu_custom_call.1} parent=0
    _
  %s8 = ssub.s32 1, %s6
  %s9 = scalar_select 0, %s8, %s6
  $region1: #{tpu_custom_call.1} parent=0
    #allocation2 [shape = 'u8[512]{0}', space=vmem, size = 0x400, scoped, tag = 'output window, operand 0, single buffered']
    #allocation3 [shape = 's32[1]{0}', space=sflag, size = 0x4, scoped, tag = 'scoped memory for tpu_custom_call.1']
    #allocation4 [shape = 'u8[512]{0}', space=vmem, size = 0x400, scoped, tag = 'output window, operand 1, single buffered']
    #allocation5 [shape = 's32[1]{0}', space=sflag, size = 0x4, scoped, tag = 'scoped memory for tpu_custom_call.1']
    %10 = vsyncpa [#allocation3], 0
    %11 = vsyncpa [#allocation5], 0
    // Predicated region
    $region2: #{tpu_custom_call.1} parent=1 // pred_check
      _
    $region3: #{tpu_custom_call.1} parent=1 // pred_check_branch
      %13 = sbr.rel (0) target = $region5
    $region4: #{tpu_custom_call.1} parent=1 // pred_region
      _
    $region5: #{tpu_custom_call.1} parent=1 // pred_fallthru
      _
    // Predicated region
    $region6: #{tpu_custom_call.1} parent=1 // pred_check
      _
    $region7: #{tpu_custom_call.1} parent=1 // pred_check_branch
      %15 = sbr.rel (0) target = $region9
    $region8: #{tpu_custom_call.1} parent=1 // pred_region
      _
    $region9: #{tpu_custom_call.1} parent=1 // pred_fallthru
      _
    // Predicated region
    $region10: #{tpu_custom_call.1} parent=1 // pred_check
      _
    $region11: #{tpu_custom_call.1} parent=1 // pred_check_branch
      %17 = sbr.rel (0) target = $region13
    $region12: #{tpu_custom_call.1} parent=1 // pred_region
      _
    $region13: #{tpu_custom_call.1} parent=1 // pred_fallthru
      _
    %v19 = vld [vmem:[%s1] sm:$0xf]
    %v20 = vld [vmem:[%s1 + $0x4] sm:$0xf]
    %v21 = vld [vmem:[%s1 + $0x8] sm:$0xf]
    %v22 = vld [vmem:[%s1 + $0xc] sm:$0xf]
    %v23 = vld [vmem:[%s1 + $0x10] sm:$0xf]
    %v24 = vld [vmem:[%s1 + $0x14] sm:$0xf]
    %v25 = vld [vmem:[%s1 + $0x18] sm:$0xf]
    %v26 = vld [vmem:[%s1 + $0x1c] sm:$0xf]
    %v27 = vld [vmem:[%s1 + $0x20] sm:$0xf]
    %v28 = vld [vmem:[%s1 + $0x24] sm:$0xf]
    %v29 = vld [vmem:[%s1 + $0x28] sm:$0xf]
    %v30 = vld [vmem:[%s1 + $0x2c] sm:$0xf]
    %v31 = vld [vmem:[%s1 + $0x30] sm:$0xf]
    %v32 = vld [vmem:[%s1 + $0x34] sm:$0xf]
    %v33 = vld [vmem:[%s1 + $0x38] sm:$0xf]
    %v34 = vld [vmem:[%s1 + $0x3c] sm:$0xf]
    %v35 = vld [vmem:[%s0] sm:$0xf]
    %v36 = vld [vmem:[%s0 + $0x4] sm:$0xf]
    %v53 = vunpack.c.l.b16 %v19
    %v54 = vunpack.c.l.b16 %v20
    %v55 = vunpack.c.l.b16 %v21
    %v56 = vunpack.c.l.b16 %v22
    %v57 = vunpack.c.l.b16 %v23
    %v58 = vunpack.c.l.b16 %v24
    %v59 = vunpack.c.l.b16 %v25
    %v60 = vunpack.c.l.b16 %v26
    %v61 = vunpack.c.l.b16 %v27
    %v62 = vunpack.c.l.b16 %v28
    %v63 = vunpack.c.l.b16 %v29
    %v64 = vunpack.c.l.b16 %v30
    %v65 = vunpack.c.l.b16 %v31
    %v66 = vunpack.c.l.b16 %v32
    %v67 = vunpack.c.l.b16 %v33
    %v68 = vunpack.c.l.b16 %v34
    %v69 = vpack.c.b16 %v54, %v53
    %v70 = vpack.c.b16 %v56, %v55
    %v71 = vpack.c.b16 %v58, %v57
    %v72 = vpack.c.b16 %v60, %v59
    %v73 = vpack.c.b16 %v62, %v61
    %v74 = vpack.c.b16 %v64, %v63
    %v75 = vpack.c.b16 %v66, %v65
    %v76 = vpack.c.b16 %v68, %v67
    %v79 = vunpack.c.l.b16 %v35
    %v80 = vunpack.c.l.b16 %v36
    %v81 = vpack.c.b16 %v80, %v79
    %vm82 = vcmask 269312
    %v84 = vsel %vm82, %v69, 0
    %v87 = vsel %vm82, %v70, 0
    %v90 = vsel %vm82, %v71, 0
    %v93 = vsel %vm82, %v72, 0
    %v96 = vsel %vm82, %v73, 0
    %v99 = vsel %vm82, %v74, 0
    %v102 = vsel %vm82, %v75, 0
    %v105 = vsel %vm82, %v76, 0
    %v108 = vsel %vm82, %v81, 0
    %110 = vmatpush.bf16.xpose.msra.mxu0 0
    %111 = vmatpush.bf16.xpose.msra.mxu0 0
    %112 = vmatpush.bf16.xpose.msra.mxu0 0
    %113 = vmatpush.bf16.xpose.msra.mxu0 0
    %114 = vmatpush.bf16.xpose.msra.mxu0 0
    %115 = vmatpush.bf16.xpose.msra.mxu0 0
    %116 = vmatpush.bf16.xpose.msra.mxu0 0
    %117 = vmatpush.bf16.xpose.msra.mxu0 %v108
    %118 = vmatmul.bf16.gmra.mxu0 %v84
    %v119 = vpop.f32.mrf.mxu0
    %v120 = vadd.f32 0.0, %v119
    %v121 = vpop.f32.mrf.mxu0
    %v122 = vadd.f32 0.0, %v121
    %123 = vmatmul.bf16.gmra.mxu0 %v87
    %v124 = vpop.f32.mrf.mxu0
    %v125 = vadd.f32 0.0, %v124
    %v126 = vpop.f32.mrf.mxu0
    %v127 = vadd.f32 0.0, %v126
    %128 = vmatmul.bf16.gmra.mxu0 %v90
    %v129 = vpop.f32.mrf.mxu0
    %v130 = vadd.f32 0.0, %v129
    %v131 = vpop.f32.mrf.mxu0
    %v132 = vadd.f32 0.0, %v131
    %133 = vmatmul.bf16.gmra.mxu0 %v93
    %v134 = vpop.f32.mrf.mxu0
    %v135 = vadd.f32 0.0, %v134
    %v136 = vpop.f32.mrf.mxu0
    %v137 = vadd.f32 0.0, %v136
    %138 = vmatmul.bf16.gmra.mxu0 %v96
    %v139 = vpop.f32.mrf.mxu0
    %v140 = vadd.f32 0.0, %v139
    %v141 = vpop.f32.mrf.mxu0
    %v142 = vadd.f32 0.0, %v141
    %143 = vmatmul.bf16.gmra.mxu0 %v99
    %v144 = vpop.f32.mrf.mxu0
    %v145 = vadd.f32 0.0, %v144
    %v146 = vpop.f32.mrf.mxu0
    %v147 = vadd.f32 0.0, %v146
    %148 = vmatmul.bf16.gmra.mxu0 %v102
    %v149 = vpop.f32.mrf.mxu0
    %v150 = vadd.f32 0.0, %v149
    %v151 = vpop.f32.mrf.mxu0
    %v152 = vadd.f32 0.0, %v151
    %153 = vmatmul.bf16.gmra.mxu0 %v105
    %v154 = vpop.f32.mrf.mxu0
    %v155 = vadd.f32 0.0, %v154
    %v156 = vpop.f32.mrf.mxu0
    %v157 = vadd.f32 0.0, %v156
    %158 = vdwg.mxu0
    %v159 = vlaneseq
    %v160 = vshrl.u32 %v159, 7
    %v161 = vadd.s32 %v160, 8
    %v162 = vadd.s32 %v160, 16
    %v163 = vadd.s32 %v160, 24
    %v164 = vadd.s32 %v160, 32
    %v165 = vadd.s32 %v160, 40
    %v166 = vadd.s32 %v160, 48
    %v167 = vadd.s32 %v160, 56
    %v168 = vadd.s32 %v160, 64
    %v169 = vadd.s32 %v160, 72
    %v170 = vadd.s32 %v160, 80
    %v171 = vadd.s32 %v160, 88
    %v172 = vadd.s32 %v160, 96
    %v173 = vadd.s32 %v160, 104
    %v174 = vadd.s32 %v160, 112
    %v175 = vadd.s32 %v160, 120
    %vm176 = vcmask 130048
    %v177 = vsel %vm176, %v120, -inf
    %v178 = vsel %vm176, %v122, -inf
    %v179 = vsel %vm176, %v125, -inf
    %v180 = vsel %vm176, %v127, -inf
    %v181 = vsel %vm176, %v130, -inf
    %v182 = vmax.f32 %v177, %v181
    %v183 = vsel %vm176, %v132, -inf
    %v184 = vmax.f32 %v178, %v183
    %v185 = vsel %vm176, %v135, -inf
    %v186 = vmax.f32 %v179, %v185
    %v187 = vsel %vm176, %v137, -inf
    %v188 = vmax.f32 %v180, %v187
    %v189 = vsel %vm176, %v140, -inf
    %v190 = vmax.f32 %v182, %v189
    %v191 = vsel %vm176, %v142, -inf
    %v192 = vmax.f32 %v184, %v191
    %v193 = vsel %vm176, %v145, -inf
    %v194 = vmax.f32 %v186, %v193
    %v195 = vsel %vm176, %v147, -inf
    %v196 = vmax.f32 %v188, %v195
    %v197 = vsel %vm176, %v150, -inf
    %v198 = vmax.f32 %v190, %v197
    %v199 = vsel %vm176, %v152, -inf
    %v200 = vmax.f32 %v192, %v199
    %v201 = vsel %vm176, %v155, -inf
    %v202 = vmax.f32 %v194, %v201
    %v203 = vsel %vm176, %v157, -inf
    %v204 = vmax.f32 %v196, %v203
    %v205 = vmax.f32 %v198, %v200
    %v206 = vmax.f32 %v202, %v204
    %v207 = vmax.f32 %v205, %v206
    %v208 = vrot.slane %v207, 4
    %v209 = vmax.f32 %v207, %v208
    %v210 = vrot.slane %v209, 2
    %v211 = vmax.f32 %v209, %v210
    %v212 = vrot.slane %v211, 1
    %v213 = vmax.f32 %v211, %v212
    %vm214 = vcmp.eq.f32.partialorder %v120, %v213
    %vm215 = vcmp.eq.f32.partialorder %v122, %v213
    %vm216 = vcmp.eq.f32.partialorder %v125, %v213
    %vm217 = vcmp.eq.f32.partialorder %v127, %v213
    %vm218 = vcmp.eq.f32.partialorder %v130, %v213
    %vm219 = vcmp.eq.f32.partialorder %v132, %v213
    %vm220 = vcmp.eq.f32.partialorder %v135, %v213
    %vm221 = vcmp.eq.f32.partialorder %v137, %v213
    %vm222 = vcmp.eq.f32.partialorder %v140, %v213
    %vm223 = vcmp.eq.f32.partialorder %v142, %v213
    %vm224 = vcmp.eq.f32.partialorder %v145, %v213
    %vm225 = vcmp.eq.f32.partialorder %v147, %v213
    %vm226 = vcmp.eq.f32.partialorder %v150, %v213
    %vm227 = vcmp.eq.f32.partialorder %v152, %v213
    %vm228 = vcmp.eq.f32.partialorder %v155, %v213
    %vm229 = vcmp.eq.f32.partialorder %v157, %v213
    %v230 = vsel %vm214, %v160, 2147483647
    %v231 = vsel %vm215, %v161, 2147483647
    %v232 = vsel %vm216, %v162, 2147483647
    %v233 = vsel %vm217, %v163, 2147483647
    %v234 = vsel %vm218, %v164, 2147483647
    %v235 = vsel %vm219, %v165, 2147483647
    %v236 = vsel %vm220, %v166, 2147483647
    %v237 = vsel %vm221, %v167, 2147483647
    %v238 = vsel %vm222, %v168, 2147483647
    %v239 = vsel %vm223, %v169, 2147483647
    %v240 = vsel %vm224, %v170, 2147483647
    %v241 = vsel %vm225, %v171, 2147483647
    %v242 = vsel %vm226, %v172, 2147483647
    %v243 = vsel %vm227, %v173, 2147483647
    %v244 = vsel %vm228, %v174, 2147483647
    %v245 = vsel %vm229, %v175, 2147483647
    %v246 = vsel %vm176, %v230, 2147483647
    %v247 = vsel %vm176, %v231, 2147483647
    %v248 = vsel %vm176, %v232, 2147483647
    %v249 = vsel %vm176, %v233, 2147483647
    %v250 = vsel %vm176, %v234, 2147483647
    %vm251 = vcmp.lt.s32.totalorder %v246, %v250
    %v252 = vsel %vm251, %v246, %v250
    %v253 = vsel %vm176, %v235, 2147483647
    %vm254 = vcmp.lt.s32.totalorder %v247, %v253
    %v255 = vsel %vm254, %v247, %v253
    %v256 = vsel %vm176, %v236, 2147483647
    %vm257 = vcmp.lt.s32.totalorder %v248, %v256
    %v258 = vsel %vm257, %v248, %v256
    %v259 = vsel %vm176, %v237, 2147483647
    %vm260 = vcmp.lt.s32.totalorder %v249, %v259
    %v261 = vsel %vm260, %v249, %v259
    %v262 = vsel %vm176, %v238, 2147483647
    %vm263 = vcmp.lt.s32.totalorder %v252, %v262
    %v264 = vsel %vm263, %v252, %v262
    %v265 = vsel %vm176, %v239, 2147483647
    %vm266 = vcmp.lt.s32.totalorder %v255, %v265
    %v267 = vsel %vm266, %v255, %v265
    %v268 = vsel %vm176, %v240, 2147483647
    %vm269 = vcmp.lt.s32.totalorder %v258, %v268
    %v270 = vsel %vm269, %v258, %v268
    %v271 = vsel %vm176, %v241, 2147483647
    %vm272 = vcmp.lt.s32.totalorder %v261, %v271
    %v273 = vsel %vm272, %v261, %v271
    %v274 = vsel %vm176, %v242, 2147483647
    %vm275 = vcmp.lt.s32.totalorder %v264, %v274
    %v276 = vsel %vm275, %v264, %v274
    %v277 = vsel %vm176, %v243, 2147483647
    %vm278 = vcmp.lt.s32.totalorder %v267, %v277
    %v279 = vsel %vm278, %v267, %v277
    %v280 = vsel %vm176, %v244, 2147483647
    %vm281 = vcmp.lt.s32.totalorder %v270, %v280
    %v282 = vsel %vm281, %v270, %v280
    %v283 = vsel %vm176, %v245, 2147483647
    %vm284 = vcmp.lt.s32.totalorder %v273, %v283
    %v285 = vsel %vm284, %v273, %v283
    %vm286 = vcmp.lt.s32.totalorder %v276, %v279
    %v287 = vsel %vm286, %v276, %v279
    %vm288 = vcmp.lt.s32.totalorder %v282, %v285
    %v289 = vsel %vm288, %v282, %v285
    %vm290 = vcmp.lt.s32.totalorder %v287, %v289
    %v291 = vsel %vm290, %v287, %v289
    %v292 = vrot.slane %v291, 4
    %vm293 = vcmp.lt.s32.totalorder %v291, %v292
    %v294 = vsel %vm293, %v291, %v292
    %v295 = vrot.slane %v294, 2
    %vm296 = vcmp.lt.s32.totalorder %v294, %v295
    %v297 = vsel %vm296, %v294, %v295
    %v298 = vrot.slane %v297, 1
    %vm299 = vcmp.lt.s32.totalorder %v297, %v298
    %v300 = vsel %vm299, %v297, %v298
    %vm301 = vcmask 122880
    %302 = vst.msk [vmem:[#allocation2] sm:$0x1] %vm301, %v300
    %v303 = vsub.f32 %v120, %v213
    %v304 = vsub.f32 %v122, %v213
    %v305 = vsub.f32 %v125, %v213
    %v306 = vsub.f32 %v127, %v213
    %v307 = vsub.f32 %v130, %v213
    %v308 = vsub.f32 %v132, %v213
    %v309 = vsub.f32 %v135, %v213
    %v310 = vsub.f32 %v137, %v213
    %v311 = vsub.f32 %v140, %v213
    %v312 = vsub.f32 %v142, %v213
    %v313 = vsub.f32 %v145, %v213
    %v314 = vsub.f32 %v147, %v213
    %v315 = vsub.f32 %v150, %v213
    %v316 = vsub.f32 %v152, %v213
    %v317 = vsub.f32 %v155, %v213
    %v318 = vsub.f32 %v157, %v213
    %v319 = vmul.f32 %v303, 1.442695
    %v320 = vpow.pop %v319
    %v321 = vmul.f32 %v304, 1.442695
    %v322 = vpow.pop %v321
    %v323 = vmul.f32 %v305, 1.442695
    %v324 = vpow.pop %v323
    %v325 = vmul.f32 %v306, 1.442695
    %v326 = vpow.pop %v325
    %v327 = vmul.f32 %v307, 1.442695
    %v328 = vpow.pop %v327
    %v329 = vmul.f32 %v308, 1.442695
    %v330 = vpow.pop %v329
    %v331 = vmul.f32 %v309, 1.442695
    %v332 = vpow.pop %v331
    %v333 = vmul.f32 %v310, 1.442695
    %v334 = vpow.pop %v333
    %v335 = vmul.f32 %v311, 1.442695
    %v336 = vpow.pop %v335
    %v337 = vmul.f32 %v312, 1.442695
    %v338 = vpow.pop %v337
    %v339 = vmul.f32 %v313, 1.442695
    %v340 = vpow.pop %v339
    %v341 = vmul.f32 %v314, 1.442695
    %v342 = vpow.pop %v341
    %v343 = vmul.f32 %v315, 1.442695
    %v344 = vpow.pop %v343
    %v345 = vmul.f32 %v316, 1.442695
    %v346 = vpow.pop %v345
    %v347 = vmul.f32 %v317, 1.442695
    %v348 = vpow.pop %v347
    %v349 = vmul.f32 %v318, 1.442695
    %v350 = vpow.pop %v349
    %v351 = vsel %vm176, %v320, 0.0
    %v352 = vsel %vm176, %v322, 0.0
    %v353 = vadd.f32 %v351, %v352
    %v354 = vsel %vm176, %v324, 0.0
    %v355 = vadd.f32 %v353, %v354
    %v356 = vsel %vm176, %v326, 0.0
    %v357 = vadd.f32 %v355, %v356
    %v358 = vsel %vm176, %v328, 0.0
    %v359 = vadd.f32 %v357, %v358
    %v360 = vsel %vm176, %v330, 0.0
    %v361 = vadd.f32 %v359, %v360
    %v362 = vsel %vm176, %v332, 0.0
    %v363 = vadd.f32 %v361, %v362
    %v364 = vsel %vm176, %v334, 0.0
    %v365 = vadd.f32 %v363, %v364
    %v366 = vsel %vm176, %v336, 0.0
    %v367 = vadd.f32 %v365, %v366
    %v368 = vsel %vm176, %v338, 0.0
    %v369 = vadd.f32 %v367, %v368
    %v370 = vsel %vm176, %v340, 0.0
    %v371 = vadd.f32 %v369, %v370
    %v372 = vsel %vm176, %v342, 0.0
    %v373 = vadd.f32 %v371, %v372
    %v374 = vsel %vm176, %v344, 0.0
    %v375 = vadd.f32 %v373, %v374
    %v376 = vsel %vm176, %v346, 0.0
    %v377 = vadd.f32 %v375, %v376
    %v378 = vsel %vm176, %v348, 0.0
    %v379 = vadd.f32 %v377, %v378
    %v380 = vsel %vm176, %v350, 0.0
    %v381 = vadd.f32 %v379, %v380
    %v382 = vrot.slane %v381, 4
    %v383 = vadd.f32 %v381, %v382
    %v384 = vrot.slane %v383, 2
    %v385 = vadd.f32 %v383, %v384
    %v386 = vrot.slane %v385, 1
    %v387 = vadd.f32 %v385, %v386
    %v388 = vlog2.pop %v387
    %v389 = vmul.f32 %v388, 0.6931472
    %v390 = vadd.f32 %v213, %v389
    %v391 = vld [vmem:[%s2] sm:$0x1]
    %v392 = vperm.slane %v391, 0
    %vm393 = vcmp.eq.s32.totalorder %v160, %v392
    %vm394 = vcmp.eq.s32.totalorder %v161, %v392
    %vm395 = vcmp.eq.s32.totalorder %v162, %v392
    %vm396 = vcmp.eq.s32.totalorder %v163, %v392
    %vm397 = vcmp.eq.s32.totalorder %v164, %v392
    %vm398 = vcmp.eq.s32.totalorder %v165, %v392
    %vm399 = vcmp.eq.s32.totalorder %v166, %v392
    %vm400 = vcmp.eq.s32.totalorder %v167, %v392
    %vm401 = vcmp.eq.s32.totalorder %v168, %v392
    %vm402 = vcmp.eq.s32.totalorder %v169, %v392
    %vm403 = vcmp.eq.s32.totalorder %v170, %v392
    %vm404 = vcmp.eq.s32.totalorder %v171, %v392
    %vm405 = vcmp.eq.s32.totalorder %v172, %v392
    %vm406 = vcmp.eq.s32.totalorder %v173, %v392
    %vm407 = vcmp.eq.s32.totalorder %v174, %v392
    %vm408 = vcmp.eq.s32.totalorder %v175, %v392
    %v409 = vsel %vm393, %v120, 0.0
    %v410 = vsel %vm394, %v122, 0.0
    %v411 = vsel %vm395, %v125, 0.0
    %v412 = vsel %vm396, %v127, 0.0
    %v413 = vsel %vm397, %v130, 0.0
    %v414 = vsel %vm398, %v132, 0.0
    %v415 = vsel %vm399, %v135, 0.0
    %v416 = vsel %vm400, %v137, 0.0
    %v417 = vsel %vm401, %v140, 0.0
    %v418 = vsel %vm402, %v142, 0.0
    %v419 = vsel %vm403, %v145, 0.0
    %v420 = vsel %vm404, %v147, 0.0
    %v421 = vsel %vm405, %v150, 0.0
    %v422 = vsel %vm406, %v152, 0.0
    %v423 = vsel %vm407, %v155, 0.0
    %v424 = vsel %vm408, %v157, 0.0
    %v425 = vsel %vm176, %v409, 0.0
    %v426 = vsel %vm176, %v410, 0.0
    %v427 = vadd.f32 %v425, %v426
    %v428 = vsel %vm176, %v411, 0.0
    %v429 = vadd.f32 %v427, %v428
    %v430 = vsel %vm176, %v412, 0.0
    %v431 = vadd.f32 %v429, %v430
    %v432 = vsel %vm176, %v413, 0.0
    %v433 = vadd.f32 %v431, %v432
    %v434 = vsel %vm176, %v414, 0.0
    %v435 = vadd.f32 %v433, %v434
    %v436 = vsel %vm176, %v415, 0.0
    %v437 = vadd.f32 %v435, %v436
    %v438 = vsel %vm176, %v416, 0.0
    %v439 = vadd.f32 %v437, %v438
    %v440 = vsel %vm176, %v417, 0.0
    %v441 = vadd.f32 %v439, %v440
    %v442 = vsel %vm176, %v418, 0.0
    %v443 = vadd.f32 %v441, %v442
    %v444 = vsel %vm176, %v419, 0.0
    %v445 = vadd.f32 %v443, %v444
    %v446 = vsel %vm176, %v420, 0.0
    %v447 = vadd.f32 %v445, %v446
    %v448 = vsel %vm176, %v421, 0.0
    %v449 = vadd.f32 %v447, %v448
    %v450 = vsel %vm176, %v422, 0.0
    %v451 = vadd.f32 %v449, %v450
    %v452 = vsel %vm176, %v423, 0.0
    %v453 = vadd.f32 %v451, %v452
    %v454 = vsel %vm176, %v424, 0.0
    %v455 = vadd.f32 %v453, %v454
    %v456 = vrot.slane %v455, 4
    %v457 = vadd.f32 %v455, %v456
    %v458 = vrot.slane %v457, 2
    %v459 = vadd.f32 %v457, %v458
    %v460 = vrot.slane %v459, 1
    %v461 = vadd.f32 %v459, %v460
    %vm462 = vcmp.ne.s32.totalorder %v391, 4294967196
    %v463 = vsub.f32 %v390, %v461
    %v464 = vsel %vm462, %v463, 0.0
    %465 = vst.msk [vmem:[#allocation4] sm:$0x1] %vm301, %v464
    // Predicated region
    $region14: #{tpu_custom_call.1} parent=1 // pred_check
      _
    $region15: #{tpu_custom_call.1} parent=1 // pred_check_branch
      %467 = sbr.rel (0) target = $region17
    $region16: #{tpu_custom_call.1} parent=1 // pred_region
      %469 = vsyncadd [#allocation3], 0
      %s471 = sshll.u32 [#allocation2], 4
      %s472 = int_to_ptr.vmem [resolvable:$true] %s471
      %s473 = sshll.u32 %s3, 4
      %s474 = int_to_ptr.hbm [resolvable:$true] %s473
      %476 = dma.vmem_to_hbm [thread:$0]  %s472, 16, %s474, [#allocation3]
    $region17: #{tpu_custom_call.1} parent=1 // pred_fallthru
      _
    // Predicated region
    $region18: #{tpu_custom_call.1} parent=1 // pred_check
      _
    $region19: #{tpu_custom_call.1} parent=1 // pred_check_branch
      %478 = sbr.rel (0) target = $region21
    $region20: #{tpu_custom_call.1} parent=1 // pred_region
      %480 = vsyncadd [#allocation5], 0
      %s482 = sshll.u32 [#allocation4], 4
      %s483 = int_to_ptr.vmem [resolvable:$true] %s482
      %s484 = sshll.u32 %s4, 4
      %s485 = int_to_ptr.hbm [resolvable:$true] %s484
      %487 = dma.vmem_to_hbm [thread:$0]  %s483, 16, %s485, [#allocation5]
    $region21: #{tpu_custom_call.1} parent=1 // pred_fallthru
      _
    // Predicated region
    $region22: #{tpu_custom_call.1} parent=1 // pred_check
      _
    $region23: #{tpu_custom_call.1} parent=1 // pred_check_branch
      %489 = sbr.rel (0) target = $region25
    $region24: #{tpu_custom_call.1} parent=1 // pred_region
      %491 = dma.done [#allocation3], 16
    $region25: #{tpu_custom_call.1} parent=1 // pred_fallthru
      _
    // Predicated region
    $region26: #{tpu_custom_call.1} parent=1 // pred_check
      _
    $region27: #{tpu_custom_call.1} parent=1 // pred_check_branch
      %493 = sbr.rel (0) target = $region29
    $region28: #{tpu_custom_call.1} parent=1 // pred_region
      %495 = dma.done [#allocation5], 16
    $region29: #{tpu_custom_call.1} parent=1 // pred_fallthru
      _
    %496 = vsyncpa [#allocation3], 1
    %497 = vsyncpa [#allocation5], 1

</llo_original>
